<compile_context>
chip_gen: v7x
topology: tpu7x:2x2x1
jax: 0.10.0
libtpu: 0.0.40
codegen_flags: <defaults>
</compile_context>

<pallas_src>
import jax
import jax.numpy as jnp
from jax.experimental import pallas as pl
from jax.experimental.pallas import tpu as pltpu

NEG_SLOPE = 0.01  # F.leaky_relu default


def _round_up(x, m):
    return ((x + m - 1) // m) * m


def wsgat_kernel(s_src_ref, mask_ref, wedge_ref, z_ref, out_ref):
    # s_src_ref: [1, Nwp]    per-word attention logits  a_src . z_w  (lane-major)
    # mask_ref:  [1, Nwp]    0.0 for real word columns, -1e30 for padding
    # wedge_ref: [TS, Nwp]   tfidf edge weights for this sentence tile
    # z_ref:     [Nwp, Dp]   projected word features (padded, lane-dense)
    # out_ref:   [TS, Dp]

    s_src = s_src_ref[...]
    wa = jnp.where(s_src > 0, s_src, NEG_SLOPE * s_src)        # leaky_relu, [1, Nwp]
    e = wedge_ref[...] * wa + mask_ref[...]                    # [TS, Nwp]

    # softmax over incoming word edges (lane axis)
    m = jnp.max(e, axis=-1, keepdims=True)
    p = jnp.exp(e - m)
    denom = jnp.sum(p, axis=-1, keepdims=True)
    alpha = p * pl.reciprocal(denom, approx=True)              # [TS, Nwp]

    # weighted sum of projected word features: out = alpha @ z  (MXU)
    out_ref[...] = jnp.dot(
        alpha, z_ref[...], preferred_element_type=jnp.float32
    ).astype(out_ref.dtype)


def wsgat_layer(h_w, wfc_t, a_src, a_dst, w_edge, *, ts=None):
    """WSGATLayer forward over a dense word->sentence bipartite graph.

    h_w:    [Nw, Din]   word node features
    wfc_t:  [Din, Dout] fc weight, already transposed (nn.Linear weight.T)
    a_src:  [Dout, 1]   first half of attn_fc weight  (source / word side)
    a_dst:  [Dout, 1]   second half of attn_fc weight (dest / sentence side)
    w_edge: [Ns, Nw]    tfidf edge weights
    returns [Ns, Dout]
    """
    del a_dst  # DGL zero-fills 'z' on sentence (dst) nodes -> this term is 0.

    Nw, _ = h_w.shape
    Dout = wfc_t.shape[1]
    Ns = w_edge.shape[0]

    # ---- hoisted per-word work (done once, outside the tiled kernel) ----
    z = jnp.dot(h_w.astype(jnp.float32), wfc_t.astype(jnp.float32),
                preferred_element_type=jnp.float32)             # [Nw, Dout]
    s_src = jnp.dot(z, a_src.astype(jnp.float32),
                    preferred_element_type=jnp.float32).reshape(1, Nw)

    # ---- lane/sublane-friendly padding ----
    Dp = _round_up(Dout, 128)      # lane-dense output & z (full MXU N columns)
    Nwp = _round_up(Nw, 128)       # lane-dense edge tiles / matmul K dim
    if ts is None:
        # Modest sentence tile keeps (ts x Nwp) edge blocks comfortably inside
        # VMEM on v7x while still amortizing per-grid-step overhead on v5e/v6e.
        ts = min(256, _round_up(Ns, 8))
    ts = max(8, _round_up(ts, 8))
    Nsp = _round_up(Ns, ts)

    z_p = jnp.pad(z, ((0, Nwp - Nw), (0, Dp - Dout)))
    s_src_p = jnp.pad(s_src, ((0, 0), (0, Nwp - Nw)))
    wedge_p = jnp.pad(w_edge.astype(jnp.float32), ((0, Nsp - Ns), (0, Nwp - Nw)))
    mask_p = jnp.pad(jnp.zeros((1, Nw), jnp.float32), ((0, 0), (0, Nwp - Nw)),
                     constant_values=-1e30)

    grid = (Nsp // ts,)
    # TODO(synk): for very large Nw (full w_edge row + z exceeding VMEM), switch
    # to a 2-D grid (sentence tile, word tile) with an online-softmax accumulator.
    out_p = pl.pallas_call(
        wsgat_kernel,
        out_shape=jax.ShapeDtypeStruct((Nsp, Dp), jnp.float32),
        grid_spec=pltpu.PrefetchScalarGridSpec(
            num_scalar_prefetch=0,
            grid=grid,
            in_specs=[
                pl.BlockSpec((1, Nwp), lambda i: (0, 0)),    # s_src row
                pl.BlockSpec((1, Nwp), lambda i: (0, 0)),    # column mask
                pl.BlockSpec((ts, Nwp), lambda i: (i, 0)),   # w_edge tile
                pl.BlockSpec((Nwp, Dp), lambda i: (0, 0)),   # z (resident)
            ],
            out_specs=pl.BlockSpec((ts, Dp), lambda i: (i, 0)),
        ),
        compiler_params=pltpu.CompilerParams(dimension_semantics=("parallel",)),
    )(s_src_p, mask_p, wedge_p, z_p)

    return out_p[:Ns, :Dout]


def reference(h_w, wfc_t, a_src, a_dst, w_edge):
    z = h_w @ wfc_t                                             # [Nw, Dout]
    z_dst = jnp.zeros((w_edge.shape[0], z.shape[1]), z.dtype)   # DGL zero-fill
    scores = (z @ a_src).T + (z_dst @ a_dst)                    # [Ns, Nw]
    wa = jnp.where(scores > 0, scores, NEG_SLOPE * scores)
    e = w_edge * wa
    alpha = jax.nn.softmax(e, axis=-1)
    return alpha @ z


if __name__ == "__main__":
    # Small synthetic problem: 16 word nodes, 8 sentence nodes, 32 -> 32 dims.
    Nw, Ns, in_dim, out_dim = 16, 8, 32, 32

    key = jax.random.PRNGKey(0)
    k_h, k_fc, k_attn, k_w = jax.random.split(key, 4)

    h_w = jax.random.normal(k_h, (Nw, in_dim), dtype=jnp.float32)

    # nn.Linear(in_dim, out_dim, bias=False).weight: [out_dim, in_dim]; pass W.T.
    wfc = jax.random.normal(k_fc, (out_dim, in_dim), dtype=jnp.float32) * 0.1
    wfc_t = wfc.T                                                # [in_dim, out_dim]

    # nn.Linear(2*out_dim, 1, bias=False).weight: [1, 2*out_dim] -> src/dst halves.
    wattn = jax.random.normal(k_attn, (1, 2 * out_dim), dtype=jnp.float32) * 0.1
    a_src = wattn[0, :out_dim].reshape(out_dim, 1)
    a_dst = wattn[0, out_dim:].reshape(out_dim, 1)

    # tfidf edge weights (positive), one per (sentence, word) edge.
    w_edge = jax.random.uniform(k_w, (Ns, Nw), dtype=jnp.float32)

    out = wsgat_layer(h_w, wfc_t, a_src, a_dst, w_edge)
    out = jax.block_until_ready(out)

    ref = reference(h_w, wfc_t, a_src, a_dst, w_edge)
    assert out.shape == (Ns, out_dim)
    assert jnp.allclose(out, ref, atol=2e-3, rtol=2e-3), float(jnp.max(jnp.abs(out - ref)))

    print("KERNEL_OK")
</pallas_src>

<mosaic_0001>
module attributes {stable_mosaic.version = 11 : i64} {
  func.func @wsgat_kernel(%arg0: i32, %arg1: memref<1x128xf32, #tpu.memory_space<vmem>>, %arg2: memref<1x128xf32, #tpu.memory_space<vmem>>, %arg3: memref<8x128xf32, #tpu.memory_space<vmem>>, %arg4: memref<128x128xf32, #tpu.memory_space<vmem>>, %arg5: memref<8x128xf32, #tpu.memory_space<vmem>>) attributes {dimension_semantics = [#tpu.dimension_semantics<parallel>], iteration_bounds = array<i64: 1>, scalar_prefetch = 0 : i64, scratch_operands = 0 : i64, tpu.core_type = #tpu.core_type<tc>, window_params = [{pipeline_mode = #tpu.pipeline_mode<synchronous>, transform_indices = @transform_0, window_bounds = array<i64: 1, 128>}, {pipeline_mode = #tpu.pipeline_mode<synchronous>, transform_indices = @transform_1, window_bounds = array<i64: 1, 128>}, {transform_indices = @transform_2, window_bounds = array<i64: 8, 128>}, {pipeline_mode = #tpu.pipeline_mode<synchronous>, transform_indices = @transform_3, window_bounds = array<i64: 128, 128>}, {transform_indices = @transform_4, window_bounds = array<i64: 8, 128>}]} {
    %c0 = arith.constant 0 : index
    %c0_0 = arith.constant 0 : index
    %0 = vector.load %arg1[%c0, %c0_0] : memref<1x128xf32, #tpu.memory_space<vmem>>, vector<1x128xf32>
    %cst = arith.constant 0.000000e+00 : f32
    %1 = vector.broadcast %cst : f32 to vector<1x128xf32>
    %2 = arith.cmpf ogt, %0, %1 : vector<1x128xf32>
    %cst_1 = arith.constant 0.00999999977 : f32
    %3 = vector.broadcast %cst_1 : f32 to vector<1x128xf32>
    %4 = arith.mulf %3, %0 : vector<1x128xf32>
    %5 = arith.select %2, %0, %4 : vector<1x128xi1>, vector<1x128xf32>
    %c0_2 = arith.constant 0 : index
    %c0_3 = arith.constant 0 : index
    %6 = vector.load %arg3[%c0_2, %c0_3] : memref<8x128xf32, #tpu.memory_space<vmem>>, vector<8x128xf32>
    %7 = vector.broadcast %5 : vector<1x128xf32> to vector<8x128xf32>
    %8 = arith.mulf %6, %7 : vector<8x128xf32>
    %c0_4 = arith.constant 0 : index
    %c0_5 = arith.constant 0 : index
    %9 = vector.load %arg2[%c0_4, %c0_5] : memref<1x128xf32, #tpu.memory_space<vmem>>, vector<1x128xf32>
    %10 = vector.broadcast %9 : vector<1x128xf32> to vector<8x128xf32>
    %11 = arith.addf %8, %10 : vector<8x128xf32>
    %cst_6 = arith.constant dense<0xFF800000> : vector<8xf32>
    %12 = vector.multi_reduction <maximumf>, %11, %cst_6 [1] : vector<8x128xf32> to vector<8xf32>
    %13 = vector.shape_cast %12 : vector<8xf32> to vector<8x1xf32>
    %14 = vector.broadcast %13 : vector<8x1xf32> to vector<8x128xf32>
    %15 = arith.subf %11, %14 : vector<8x128xf32>
    %16 = math.exp %15 : vector<8x128xf32>
    %cst_7 = arith.constant dense<0.000000e+00> : vector<8xf32>
    %17 = vector.multi_reduction <add>, %16, %cst_7 [1] : vector<8x128xf32> to vector<8xf32>
    %18 = vector.shape_cast %17 : vector<8xf32> to vector<8x1xf32>
    %19 = tpu.reciprocal %18 {approx = true} : vector<8x1xf32> -> vector<8x1xf32>
    %20 = vector.broadcast %19 : vector<8x1xf32> to vector<8x128xf32>
    %21 = arith.mulf %16, %20 : vector<8x128xf32>
    %c0_8 = arith.constant 0 : index
    %c0_9 = arith.constant 0 : index
    %22 = vector.load %arg4[%c0_8, %c0_9] : memref<128x128xf32, #tpu.memory_space<vmem>>, vector<128x128xf32>
    %cst_10 = arith.constant dense<0.000000e+00> : vector<8x128xf32>
    %23 = tpu.matmul %21, %22, %cst_10 {dimension_numbers = #tpu.dot_dimension_numbers<[1], [0], [0], [1], [0, 0, 1, 1], [], []>} : vector<8x128xf32>, vector<128x128xf32>, vector<8x128xf32> -> vector<8x128xf32>
    %c0_11 = arith.constant 0 : index
    %c0_12 = arith.constant 0 : index
    %24 = vector.load %arg5[%c0_11, %c0_12] : memref<8x128xf32, #tpu.memory_space<vmem>>, vector<8x128xf32>
    tpu.vector_store %arg5[%c0_11, %c0_12], %23 {strides = array<i32>} : memref<8x128xf32, #tpu.memory_space<vmem>>, vector<8x128xf32>,
    return
  }
  func.func @transform_0(%arg0: i32) -> (i32, i32) {
    %c0_i32 = arith.constant 0 : i32
    %c0_i32_0 = arith.constant 0 : i32
    %c0_i32_1 = arith.constant 0 : i32
    return %c0_i32, %c0_i32_0 : i32, i32
  }
  func.func @transform_1(%arg0: i32) -> (i32, i32) {
    %c0_i32 = arith.constant 0 : i32
    %c0_i32_0 = arith.constant 0 : i32
    %c0_i32_1 = arith.constant 0 : i32
    return %c0_i32, %c0_i32_0 : i32, i32
  }
  func.func @transform_2(%arg0: i32) -> (i32, i32) {
    %c0_i32 = arith.constant 0 : i32
    %c0_i32_0 = arith.constant 0 : i32
    return %arg0, %c0_i32 : i32, i32
  }
  func.func @transform_3(%arg0: i32) -> (i32, i32) {
    %c0_i32 = arith.constant 0 : i32
    %c0_i32_0 = arith.constant 0 : i32
    %c0_i32_1 = arith.constant 0 : i32
    return %c0_i32, %c0_i32_0 : i32, i32
  }
  func.func @transform_4(%arg0: i32) -> (i32, i32) {
    %c0_i32 = arith.constant 0 : i32
    %c0_i32_0 = arith.constant 0 : i32
    return %arg0, %c0_i32 : i32, i32
  }
}

</mosaic_0001>

<llo_original>
// kernel: tpu_custom_call.1
$region0: #{tpu_custom_call.1}
  #allocation0 [shape = 'u32[]', space=smem, size = 0x4, offset = 0x4, fixed_abs, tag = 'smem constant byte address 0x4 - core index']
  #allocation1 [shape = 'u32[144,128]{1,0:T(1,128)}', space=vmem, size = 0x12000, scoped, tag = 'internal scratch']
  %s0 = inlined_call_operand.hbm [shape: f32[1,128], index: 0, kind: input, shape index: {}]
  %s1 = inlined_call_operand.vmem [shape: f32[1,128], index: 1, kind: input, shape index: {}]
  %s2 = inlined_call_operand.hbm [shape: f32[8,128], index: 2, kind: input, shape index: {}]
  %s3 = inlined_call_operand.hbm [shape: f32[128,128], index: 3, kind: input, shape index: {}]
  %s4 = inlined_call_operand.hbm [shape: f32[8,128], index: 4, kind: output, shape index: {}]
  %s5 = sld [smem:[#allocation0]]
  $region38: #{tpu_custom_call.1} parent=0
    _
  %s7 = ssub.s32 1, %s5
  %s8 = scalar_select 0, %s7, %s5
  $region1: #{tpu_custom_call.1} parent=0
    #allocation2 [shape = 'u8[512]{0}', space=vmem, size = 0x400, scoped, tag = 'input window, operand 0, single buffered']
    #allocation3 [shape = 's32[1]{0}', space=sflag, size = 0x4, scoped, tag = 'scoped memory for tpu_custom_call.1']
    #allocation4 [shape = 's32[1]{0}', space=sflag, size = 0x4, scoped, tag = 'scoped memory for tpu_custom_call.1']
    #allocation5 [shape = 'u8[4096]{0}', space=vmem, size = 0x1000, scoped, tag = 'input window, operand 2, single buffered']
    #allocation6 [shape = 's32[1]{0}', space=sflag, size = 0x4, scoped, tag = 'scoped memory for tpu_custom_call.1']
    #allocation7 [shape = 'u8[65536]{0}', space=vmem, size = 0x10000, scoped, tag = 'input window, operand 3, single buffered']
    #allocation8 [shape = 'u8[4096]{0}', space=vmem, size = 0x1000, scoped, tag = 'output window, operand 0, single buffered']
    %9 = vsyncpa [#allocation3], 0
    %10 = vsyncpa [#allocation6], 0
    %11 = vsyncpa [#allocation4], 0
    // Predicated region
    $region2: #{tpu_custom_call.1} parent=1 // pred_check
      _
    $region3: #{tpu_custom_call.1} parent=1 // pred_check_branch
      %13 = sbr.rel (0) target = $region5
    $region4: #{tpu_custom_call.1} parent=1 // pred_region
      %s15 = ssub.s32 16, 16
      %16 = vsyncadd [#allocation3], %s15
      %s18 = sshll.u32 [#allocation2], 4
      %s19 = int_to_ptr.vmem [resolvable:$true] %s18
      %21 = dma.hbm_to_vmem [thread:$0]  %s0, 16, %s19, [#allocation3]
    $region5: #{tpu_custom_call.1} parent=1 // pred_fallthru
      _
    // Predicated region
    $region6: #{tpu_custom_call.1} parent=1 // pred_check
      _
    $region7: #{tpu_custom_call.1} parent=1 // pred_check_branch
      %23 = sbr.rel (0) target = $region9
    $region8: #{tpu_custom_call.1} parent=1 // pred_region
      _
    $region9: #{tpu_custom_call.1} parent=1 // pred_fallthru
      _
    // Predicated region
    $region10: #{tpu_custom_call.1} parent=1 // pred_check
      _
    $region11: #{tpu_custom_call.1} parent=1 // pred_check_branch
      %25 = sbr.rel (0) target = $region13
    $region12: #{tpu_custom_call.1} parent=1 // pred_region
      %s27 = ssub.s32 128, 128
      %28 = vsyncadd [#allocation6], %s27
      %s30 = sshll.u32 [#allocation5], 4
      %s31 = int_to_ptr.vmem [resolvable:$true] %s30
      %33 = dma.hbm_to_vmem [thread:$0]  %s2, 128, %s31, [#allocation6]
    $region13: #{tpu_custom_call.1} parent=1 // pred_fallthru
      _
    // Predicated region
    $region14: #{tpu_custom_call.1} parent=1 // pred_check
      _
    $region15: #{tpu_custom_call.1} parent=1 // pred_check_branch
      %35 = sbr.rel (0) target = $region17
    $region16: #{tpu_custom_call.1} parent=1 // pred_region
      %s37 = ssub.s32 2048, 2048
      %38 = vsyncadd [#allocation6], %s37
      %s39 = sshll.u32 [#allocation7], 4
      %s40 = int_to_ptr.vmem [resolvable:$true] %s39
      %45 = dma.hbm_to_vmem [thread:$0]  %s3, 2048, %s40, [#allocation6], 128, 128, 8
    $region17: #{tpu_custom_call.1} parent=1 // pred_fallthru
      _
    // Predicated region
    $region18: #{tpu_custom_call.1} parent=1 // pred_check
      _
    $region19: #{tpu_custom_call.1} parent=1 // pred_check_branch
      %47 = sbr.rel (0) target = $region21
    $region20: #{tpu_custom_call.1} parent=1 // pred_region
      %48 = dma.done [#allocation3], 16
    $region21: #{tpu_custom_call.1} parent=1 // pred_fallthru
      _
    // Predicated region
    $region22: #{tpu_custom_call.1} parent=1 // pred_check
      _
    $region23: #{tpu_custom_call.1} parent=1 // pred_check_branch
      %50 = sbr.rel (0) target = $region25
    $region24: #{tpu_custom_call.1} parent=1 // pred_region
      %51 = dma.done [#allocation6], 128
    $region25: #{tpu_custom_call.1} parent=1 // pred_fallthru
      _
    // Predicated region
    $region26: #{tpu_custom_call.1} parent=1 // pred_check
      _
    $region27: #{tpu_custom_call.1} parent=1 // pred_check_branch
      %53 = sbr.rel (0) target = $region29
    $region28: #{tpu_custom_call.1} parent=1 // pred_region
      %54 = dma.done [#allocation6], 2048
    $region29: #{tpu_custom_call.1} parent=1 // pred_fallthru
      _
    %v55 = vld [vmem:[#allocation2] sm:$0x1]
    %vm56 = vcmp.gt.f32.partialorder %v55, 0.0
    %v57 = vmul.f32 %v55, 0.01
    %v58 = vsel %vm56, %v55, %v57
    %v59 = vld [vmem:[#allocation5] sm:$0xff]
    %v61 = vlaneseq
    %v62 = vshrl.u32 %v61, 7
    %v63 = vsub.s32 0, %v62
    %v64 = vrot.slane %v58, %v63
    %v66 = vmul.f32 %v59, %v64
    %v67 = vld [vmem:[%s1] sm:$0x1]
    %v69 = vlaneseq
    %v70 = vshrl.u32 %v69, 7
    %v71 = vsub.s32 0, %v70
    %v72 = vrot.slane %v67, %v71
    %v74 = vadd.f32 %v66, %v72
    %75 = vmax.xlane.f32.xlu0 %v74
    %v76 = vpop.xlane.xlu0 %75
    %v77 = vsub.f32 %v74, %v76
    %v78 = vmul.f32 %v77, 1.442695
    %v79 = vpow.pop %v78
    %80 = vadd.xlane.f32.xlu0 %v79
    %v81 = vpop.xlane.xlu0 %80
    %v82 = vrcp.pop %v81
    %v83 = vmul.f32 %v79, %v82
    %v84 = vld [vmem:[#allocation7] sm:$0xff]
    %v85 = vld [vmem:[#allocation7 + $0x8] sm:$0xff]
    %v86 = vld [vmem:[#allocation7 + $0x10] sm:$0xff]
    %v87 = vld [vmem:[#allocation7 + $0x18] sm:$0xff]
    %v88 = vld [vmem:[#allocation7 + $0x20] sm:$0xff]
    %v89 = vld [vmem:[#allocation7 + $0x28] sm:$0xff]
    %v90 = vld [vmem:[#allocation7 + $0x30] sm:$0xff]
    %v91 = vld [vmem:[#allocation7 + $0x38] sm:$0xff]
    %v92 = vld [vmem:[#allocation7 + $0x40] sm:$0xff]
    %v93 = vld [vmem:[#allocation7 + $0x48] sm:$0xff]
    %v94 = vld [vmem:[#allocation7 + $0x50] sm:$0xff]
    %v95 = vld [vmem:[#allocation7 + $0x58] sm:$0xff]
    %v96 = vld [vmem:[#allocation7 + $0x60] sm:$0xff]
    %v97 = vld [vmem:[#allocation7 + $0x68] sm:$0xff]
    %v98 = vld [vmem:[#allocation7 + $0x70] sm:$0xff]
    %v99 = vld [vmem:[#allocation7 + $0x78] sm:$0xff]
    %100 = vmatprep.subr.mxu0 0.0
    %101 = vmatpush1.msra.mxu0 %v84
    %102 = vmatprep.subr.mxu0 0.0
    %103 = vmatpush1.msra.mxu0 %v85
    %104 = vmatprep.subr.mxu0 0.0
    %105 = vmatpush1.msra.mxu0 %v86
    %106 = vmatprep.subr.mxu0 0.0
    %107 = vmatpush1.msra.mxu0 %v87
    %108 = vmatprep.subr.mxu0 0.0
    %109 = vmatpush1.msra.mxu0 %v88
    %110 = vmatprep.subr.mxu0 0.0
    %111 = vmatpush1.msra.mxu0 %v89
    %112 = vmatprep.subr.mxu0 0.0
    %113 = vmatpush1.msra.mxu0 %v90
    %114 = vmatprep.subr.mxu0 0.0
    %115 = vmatpush1.msra.mxu0 %v91
    %116 = vmatprep.subr.mxu0 0.0
    %117 = vmatpush1.msra.mxu0 %v92
    %118 = vmatprep.subr.mxu0 0.0
    %119 = vmatpush1.msra.mxu0 %v93
    %120 = vmatprep.subr.mxu0 0.0
    %121 = vmatpush1.msra.mxu0 %v94
    %122 = vmatprep.subr.mxu0 0.0
    %123 = vmatpush1.msra.mxu0 %v95
    %124 = vmatprep.subr.mxu0 0.0
    %125 = vmatpush1.msra.mxu0 %v96
    %126 = vmatprep.subr.mxu0 0.0
    %127 = vmatpush1.msra.mxu0 %v97
    %128 = vmatprep.subr.mxu0 0.0
    %129 = vmatpush1.msra.mxu0 %v98
    %130 = vmatprep.subr.mxu0 0.0
    %131 = vmatpush1.msra.mxu0 %v99
    %132 = vmatprep.subr.mxu0 0.0
    %133 = vmatpush1.msra.mxu0 0.0
    %134 = vmatprep.subr.mxu0 0.0
    %135 = vmatpush1.msra.mxu0 0.0
    %136 = vmatprep.subr.mxu0 0.0
    %137 = vmatpush1.msra.mxu0 0.0
    %138 = vmatprep.subr.mxu0 0.0
    %139 = vmatpush1.msra.mxu0 0.0
    %140 = vmatprep.subr.mxu0 0.0
    %141 = vmatpush1.msra.mxu0 0.0
    %142 = vmatprep.subr.mxu0 0.0
    %143 = vmatpush1.msra.mxu0 0.0
    %144 = vmatprep.subr.mxu0 0.0
    %145 = vmatpush1.msra.mxu0 0.0
    %146 = vmatprep.subr.mxu0 0.0
    %147 = vmatpush1.msra.mxu0 0.0
    %148 = vmatprep.subr.mxu0 0.0
    %149 = vmatpush1.msra.mxu0 0.0
    %150 = vmatprep.subr.mxu0 0.0
    %151 = vmatpush1.msra.mxu0 0.0
    %152 = vmatprep.subr.mxu0 0.0
    %153 = vmatpush1.msra.mxu0 0.0
    %154 = vmatprep.subr.mxu0 0.0
    %155 = vmatpush1.msra.mxu0 0.0
    %156 = vmatprep.subr.mxu0 0.0
    %157 = vmatpush1.msra.mxu0 0.0
    %158 = vmatprep.subr.mxu0 0.0
    %159 = vmatpush1.msra.mxu0 0.0
    %160 = vmatprep.subr.mxu0 0.0
    %161 = vmatpush1.msra.mxu0 0.0
    %162 = vmatprep.subr.mxu0 0.0
    %163 = vmatpush1.msra.mxu0 0.0
    %164 = vmatprep.mubr.f32.mxu0 0.0
    %165 = vmatmul.mubr.f32.gmra.mrb[0].mxu0 %v83
    %v166 = vpop.f32.mrb[0].mxu0
    %v167 = vadd.f32 0.0, %v166
    %v168 = vpop.f32.mrb[0].mxu0
    %169 = vdwg.mxu0
    %170 = vst [vmem:[#allocation8] sm:$0xff] %v167
    // Predicated region
    $region30: #{tpu_custom_call.1} parent=1 // pred_check
      _
    $region31: #{tpu_custom_call.1} parent=1 // pred_check_branch
      %172 = sbr.rel (0) target = $region33
    $region32: #{tpu_custom_call.1} parent=1 // pred_region
      %s174 = ssub.s32 128, 128
      %175 = vsyncadd [#allocation4], %s174
      %s177 = sshll.u32 [#allocation8], 4
      %s178 = int_to_ptr.vmem [resolvable:$true] %s177
      %180 = dma.vmem_to_hbm [thread:$0]  %s178, 128, %s4, [#allocation4]
    $region33: #{tpu_custom_call.1} parent=1 // pred_fallthru
      _
    // Predicated region
    $region34: #{tpu_custom_call.1} parent=1 // pred_check
      _
    $region35: #{tpu_custom_call.1} parent=1 // pred_check_branch
      %182 = sbr.rel (0) target = $region37
    $region36: #{tpu_custom_call.1} parent=1 // pred_region
      %183 = dma.done [#allocation4], 128
    $region37: #{tpu_custom_call.1} parent=1 // pred_fallthru
      _
    %184 = vsyncpa [#allocation3], 1
    %185 = vsyncpa [#allocation6], 1
    %186 = vsyncpa [#allocation4], 1

</llo_original>
